<compile_context>
chip_gen: v6e
topology: v6e:2x2x1
jax: 0.10.0
libtpu: 0.0.40
codegen_flags: <defaults>
</compile_context>

<pallas_src>
import jax
import jax.numpy as jnp
from jax import lax
from jax.experimental import pallas as pl
from jax.experimental.pallas import tpu as pltpu


def _make_kernel(W, L, HB, has_halo):
    """Kernel closure for static width W, strip length L = TH*W, halo block HB."""
    f32 = jnp.float32

    def _dw_pw(mid, up, down, wdw_ref, wpw_ref, b_ref, o_ref):
        # Column masks for the +/-1 shifts along W (zero padding at w=0 / w=W-1).
        wcol = lax.broadcasted_iota(jnp.int32, (1, L), 1) % W
        m_l = (wcol > 0).astype(f32)
        m_r = (wcol < W - 1).astype(f32)

        wdw = wdw_ref[...].astype(f32)                         # (Cin, 9), k = kh*3 + kw

        # Factor the 3x3 stencil: reduce over kh first (pure VPU), then one lane shift per
        # column offset.  2 rolls + 2 mask muls instead of 6 + 6.
        srcs = (up, mid, down)
        col = []
        for kw in range(3):
            s = srcs[0] * wdw[:, kw:kw + 1]
            for kh in range(1, 3):
                k = kh * 3 + kw
                s = s + srcs[kh] * wdw[:, k:k + 1]
            col.append(s)
        acc = (pltpu.roll(col[0], 1, axis=1) * m_l              # input column w-1
               + col[1]                                         # input column w
               + pltpu.roll(col[2], L - 1, axis=1) * m_r)       # input column w+1

        # 1x1 pointwise: (Cout, Cin) @ (Cin, TH*W) -> lane-dense (Cout, TH*W) slab (MXU).
        out = jnp.dot(wpw_ref[...].astype(f32), acc,
                      preferred_element_type=jnp.float32)
        out = out + b_ref[...].astype(f32)
        o_ref[0] = out.astype(o_ref.dtype)

    if has_halo:
        def kernel(x_mid_ref, x_top_ref, x_bot_ref, wdw_ref, wpw_ref, b_ref, o_ref):
            # x_mid_ref: (1, Cin, L)   current strip, spatial flattened row-major (p = h*W + w)
            # x_top_ref: (1, Cin, HB)  lane-aligned block whose LAST  W lanes are image row i*TH-1
            # x_bot_ref: (1, Cin, HB)  lane-aligned block whose FIRST W lanes are image row (i+1)*TH
            i = pl.program_id(1)
            n_strips = pl.num_programs(1)

            mid = x_mid_ref[0].astype(f32)                      # (Cin, L)

            # Halo rows; zero when outside the image (top of first / bottom of last strip).
            top = x_top_ref[0, :, HB - W:].astype(f32) * (i > 0).astype(f32)            # (Cin, W)
            bot = x_bot_ref[0, :, :W].astype(f32) * (i < n_strips - 1).astype(f32)      # (Cin, W)

            # Row-shifted sources: value at flat p = h*W + w is input row h-1 / h+1.
            up = jnp.concatenate([top, mid[:, :L - W]], axis=1)   # (Cin, L)
            down = jnp.concatenate([mid[:, W:], bot], axis=1)     # (Cin, L)

            _dw_pw(mid, up, down, wdw_ref, wpw_ref, b_ref, o_ref)
        return kernel

    def kernel(x_mid_ref, wdw_ref, wpw_ref, b_ref, o_ref):
        # Whole image in one strip: no halo inputs; top/bottom padding is pure masking.
        mid = x_mid_ref[0].astype(f32)                          # (Cin, L)
        flat = lax.broadcasted_iota(jnp.int32, (1, L), 1)
        m_top = (flat >= W).astype(f32)                         # output row h > 0
        m_bot = (flat < L - W).astype(f32)                      # output row h < H-1
        up = pltpu.roll(mid, W, axis=1) * m_top                 # input row h-1
        down = pltpu.roll(mid, L - W, axis=1) * m_bot           # input row h+1
        _dw_pw(mid, up, down, wdw_ref, wpw_ref, b_ref, o_ref)

    return kernel


def _pick_tiles(H, W, Cin, Cout, itemsize, tile_h):
    """Choose strip height TH and halo block width HB (flattened H*W elements).

    Blocks stay lane-aligned: TH*W and HB are multiples of 128 (or span the full flattened
    axis).  Falls back to a single whole-image strip for awkward widths (halo-free path).
    """
    if W % 128 == 0:
        hb = W
    elif 128 % W == 0 and H * W >= 128:
        hb = 128
    else:
        hb = None  # cannot place a single row at a fixed offset of an aligned block

    def valid(th):
        return (hb is not None and H % th == 0
                and (th * W) % 128 == 0 and (th * W) % hb == 0)

    if tile_h is not None:
        if tile_h != H and not valid(tile_h):
            raise ValueError(f"tile_h={tile_h} is not a valid strip height for H={H}, W={W}")
        th = tile_h
    else:
        # Largest strip whose working set (double-buffered DMA blocks + f32 temporaries)
        # fits a conservative budget: safe under v5e's 16 MiB default scoped VMEM (we also
        # raise the limit to 32 MiB), v6e (32/128 MiB) and v7x (32/64 MiB).
        budget = 6 << 20

        def strip_bytes(th):
            l = th * W
            dma = 2 * (Cin * l + 2 * Cin * hb + Cout * l) * itemsize
            live = (4 * Cin + 2 * Cout) * l * 4
            return dma + live

        cands = [t for t in range(1, H + 1) if valid(t)]
        fitting = [t for t in cands if strip_bytes(t) <= budget]
        th = max(fitting) if fitting else (min(cands) if cands else H)

    return th, hb


def depthwise_separable_conv(x, w_dw, b_dw, w_pw, b_pw, *, tile_h=None):
    """NCHW depthwise-separable conv matching the PyTorch module.

    x: (N, Cin, H, W); w_dw: (Cin, 1, 3, 3); b_dw: (Cin,); w_pw: (Cout, Cin, 1, 1);
    b_pw: (Cout,). Returns (N, Cout, H, W).
    """
    N, Cin, H, W = x.shape
    Cout = w_pw.shape[0]

    TH, HB = _pick_tiles(H, W, Cin, Cout, x.dtype.itemsize, tile_h)
    L = TH * W
    n_strips = H // TH
    has_halo = n_strips > 1

    # Free views only: no transpose, no pre-padded copy, no extra HBM passes.
    xf = x.reshape(N, Cin, H * W)

    wdw = w_dw.reshape(Cin, 9).astype(jnp.float32)              # taps, k = kh*3 + kw
    wpw = w_pw.reshape(Cout, Cin).astype(jnp.float32)
    # Fold the depthwise bias into the pointwise bias (pointwise is linear):
    #   Wpw (conv_dw(x) + b_dw) + b_pw = Wpw conv_dw(x) + (Wpw b_dw + b_pw)
    b_eff = (wpw @ b_dw.reshape(Cin, 1).astype(jnp.float32)
             + b_pw.reshape(Cout, 1).astype(jnp.float32))       # (Cout, 1)

    kernel = _make_kernel(W, L, HB, has_halo)

    common_specs = [
        pl.BlockSpec((Cin, 9), lambda n, i: (0, 0)),
        pl.BlockSpec((Cout, Cin), lambda n, i: (0, 0)),
        pl.BlockSpec((Cout, 1), lambda n, i: (0, 0)),
    ]
    mid_spec = pl.BlockSpec((1, Cin, L), lambda n, i: (n, 0, i))  # current strip, lane-dense

    if has_halo:
        n_hblocks = (H * W) // HB
        k = L // HB  # halo-block index step per strip
        in_specs = [
            mid_spec,
            # halo block whose last W lanes hold image row i*TH - 1 (masked for i == 0)
            pl.BlockSpec((1, Cin, HB),
                         lambda n, i: (n, 0, jnp.maximum(i * k - 1, 0))),
            # halo block whose first W lanes hold image row (i+1)*TH (masked for last i)
            pl.BlockSpec((1, Cin, HB),
                         lambda n, i: (n, 0, jnp.minimum((i + 1) * k, n_hblocks - 1))),
        ] + common_specs
        args = (xf, xf, xf, wdw, wpw, b_eff)
    else:
        in_specs = [mid_spec] + common_specs
        args = (xf, wdw, wpw, b_eff)

    out_flat = pl.pallas_call(
        kernel,
        out_shape=jax.ShapeDtypeStruct((N, Cout, H * W), x.dtype),
        grid_spec=pltpu.PrefetchScalarGridSpec(
            num_scalar_prefetch=0,
            grid=(N, n_strips),
            in_specs=in_specs,
            out_specs=pl.BlockSpec((1, Cout, L), lambda n, i: (n, 0, i)),
        ),
        compiler_params=pltpu.CompilerParams(
            # batch and H-strips are independent -> shard across TensorCores (v7x megacore)
            dimension_semantics=("parallel", "parallel"),
            # raise scoped VMEM above v5e's 16 MiB default; strips are sized to ~6 MiB so
            # this also leaves comfortable headroom on v7x's 64 MiB physical VMEM.
            vmem_limit_bytes=32 * 1024 * 1024,
        ),
    )(*args)

    return out_flat.reshape(N, Cout, H, W)  # free view


def _reference(x, w_dw, b_dw, w_pw, b_pw):
    """Pure-JAX NCHW reference matching nn.Conv2d semantics."""
    Cin = x.shape[1]
    dw = lax.conv_general_dilated(
        x, w_dw, window_strides=(1, 1), padding=((1, 1), (1, 1)),
        dimension_numbers=("NCHW", "OIHW", "NCHW"),
        feature_group_count=Cin)
    dw = dw + b_dw.reshape(1, -1, 1, 1)
    pw = lax.conv_general_dilated(
        dw, w_pw, window_strides=(1, 1), padding=((0, 0), (0, 0)),
        dimension_numbers=("NCHW", "OIHW", "NCHW"))
    return pw + b_pw.reshape(1, -1, 1, 1)


if __name__ == "__main__":
    N, Cin, Cout, H, W = 2, 4, 8, 16, 16

    key = jax.random.PRNGKey(0)
    k_x, k_wdw, k_bdw, k_wpw, k_bpw = jax.random.split(key, 5)

    x = jax.random.normal(k_x, (N, Cin, H, W), dtype=jnp.float32)
    w_dw = 0.1 * jax.random.normal(k_wdw, (Cin, 1, 3, 3), dtype=jnp.float32)
    b_dw = 0.1 * jax.random.normal(k_bdw, (Cin,), dtype=jnp.float32)
    w_pw = 0.1 * jax.random.normal(k_wpw, (Cout, Cin, 1, 1), dtype=jnp.float32)
    b_pw = 0.1 * jax.random.normal(k_bpw, (Cout,), dtype=jnp.float32)

    ref = jax.block_until_ready(_reference(x, w_dw, b_dw, w_pw, b_pw))

    # Default auto-tiling: whole 16x16 image -> one strip per batch element (halo-free path).
    out = jax.block_until_ready(depthwise_separable_conv(x, w_dw, b_dw, w_pw, b_pw))
    assert out.shape == (N, Cout, H, W)
    assert jnp.allclose(out, ref, atol=1e-4, rtol=1e-4), "mismatch vs reference (auto tiling)"

    # Force two H-strips per image to exercise the halo / strip-tiling path.
    out2 = jax.block_until_ready(
        depthwise_separable_conv(x, w_dw, b_dw, w_pw, b_pw, tile_h=8))
    assert jnp.allclose(out2, ref, atol=1e-4, rtol=1e-4), "mismatch vs reference (strip tiling)"

    print("KERNEL_OK")
</pallas_src>

<mosaic_0001>
module attributes {stable_mosaic.version = 11 : i64} {
  func.func @kernel(%arg0: i32, %arg1: i32, %arg2: memref<1x4x256xf32, #tpu.memory_space<vmem>>, %arg3: memref<4x9xf32, #tpu.memory_space<vmem>>, %arg4: memref<8x4xf32, #tpu.memory_space<vmem>>, %arg5: memref<8x1xf32, #tpu.memory_space<vmem>>, %arg6: memref<1x8x256xf32, #tpu.memory_space<vmem>>) attributes {dimension_semantics = [#tpu.dimension_semantics<parallel>, #tpu.dimension_semantics<parallel>], iteration_bounds = array<i64: 2, 1>, scalar_prefetch = 0 : i64, scratch_operands = 0 : i64, tpu.core_type = #tpu.core_type<tc>, window_params = [{transform_indices = @transform_0, window_bounds = array<i64: 1, 4, 256>}, {pipeline_mode = #tpu.pipeline_mode<synchronous>, transform_indices = @transform_1, window_bounds = array<i64: 4, 9>}, {pipeline_mode = #tpu.pipeline_mode<synchronous>, transform_indices = @transform_2, window_bounds = array<i64: 8, 4>}, {pipeline_mode = #tpu.pipeline_mode<synchronous>, transform_indices = @transform_3, window_bounds = array<i64: 8, 1>}, {transform_indices = @transform_4, window_bounds = array<i64: 1, 8, 256>}]} {
    %c0 = arith.constant 0 : index
    %c0_0 = arith.constant 0 : index
    %c0_1 = arith.constant 0 : index
    %0 = vector.load %arg2[%c0, %c0_0, %c0_1] : memref<1x4x256xf32, #tpu.memory_space<vmem>>, vector<1x4x256xf32>
    %1 = vector.shape_cast %0 : vector<1x4x256xf32> to vector<4x256xf32>
    %2 = tpu.iota {dimensions = array<i32: 1>} : vector<1x256xi32>
    %c16_i32 = arith.constant 16 : i32
    %3 = vector.broadcast %c16_i32 : i32 to vector<1x256xi32>
    %4 = arith.cmpi sge, %2, %3 : vector<1x256xi32>
    %5 = arith.extui %4 : vector<1x256xi1> to vector<1x256xi32>
    %6 = arith.sitofp %5 : vector<1x256xi32> to vector<1x256xf32>
    %c240_i32 = arith.constant 240 : i32
    %7 = vector.broadcast %c240_i32 : i32 to vector<1x256xi32>
    %8 = arith.cmpi slt, %2, %7 : vector<1x256xi32>
    %9 = arith.extui %8 : vector<1x256xi1> to vector<1x256xi32>
    %10 = arith.sitofp %9 : vector<1x256xi32> to vector<1x256xf32>
    %c16_i32_2 = arith.constant 16 : i32
    %11 = tpu.dynamic_rotate %1 by %c16_i32_2 dim 1 : vector<4x256xf32>, i32 -> vector<4x256xf32>
    %12 = vector.broadcast %6 : vector<1x256xf32> to vector<4x256xf32>
    %13 = arith.mulf %11, %12 : vector<4x256xf32>
    %c240_i32_3 = arith.constant 240 : i32
    %14 = tpu.dynamic_rotate %1 by %c240_i32_3 dim 1 : vector<4x256xf32>, i32 -> vector<4x256xf32>
    %15 = vector.broadcast %10 : vector<1x256xf32> to vector<4x256xf32>
    %16 = arith.mulf %14, %15 : vector<4x256xf32>
    %17 = tpu.iota {dimensions = array<i32: 1>} : vector<1x256xi32>
    %c16_i32_4 = arith.constant 16 : i32
    %c0_i32 = arith.constant 0 : i32
    %18 = arith.cmpi eq, %c16_i32_4, %c0_i32 : i32
    %c1_i32 = arith.constant 1 : i32
    %19 = arith.select %18, %c1_i32, %c16_i32_4 : i32
    %20 = vector.broadcast %19 : i32 to vector<1x256xi32>
    %21 = arith.remsi %17, %20 : vector<1x256xi32>
    %c0_i32_5 = arith.constant 0 : i32
    %22 = vector.broadcast %c0_i32_5 : i32 to vector<1x256xi32>
    %23 = arith.cmpi ne, %21, %22 : vector<1x256xi32>
    %c0_i32_6 = arith.constant 0 : i32
    %24 = vector.broadcast %c0_i32_6 : i32 to vector<1x256xi32>
    %25 = arith.cmpi slt, %21, %24 : vector<1x256xi32>
    %c0_i32_7 = arith.constant 0 : i32
    %26 = arith.cmpi slt, %19, %c0_i32_7 : i32
    %27 = vector.broadcast %26 : i1 to vector<1x256xi1>
    %28 = vector.broadcast %27 : vector<1x256xi1> to vector<1x256xi1>
    %29 = arith.xori %25, %28 : vector<1x256xi1>
    %30 = arith.andi %29, %23 : vector<1x256xi1>
    %31 = vector.broadcast %19 : i32 to vector<1x256xi32>
    %32 = arith.addi %21, %31 : vector<1x256xi32>
    %33 = arith.select %30, %32, %21 : vector<1x256xi1>, vector<1x256xi32>
    %c0_i32_8 = arith.constant 0 : i32
    %34 = vector.broadcast %c0_i32_8 : i32 to vector<1x256xi32>
    %35 = arith.cmpi sgt, %33, %34 : vector<1x256xi32>
    %36 = arith.extui %35 : vector<1x256xi1> to vector<1x256xi32>
    %37 = arith.sitofp %36 : vector<1x256xi32> to vector<1x256xf32>
    %c15_i32 = arith.constant 15 : i32
    %38 = vector.broadcast %c15_i32 : i32 to vector<1x256xi32>
    %39 = arith.cmpi slt, %33, %38 : vector<1x256xi32>
    %40 = arith.extui %39 : vector<1x256xi1> to vector<1x256xi32>
    %41 = arith.sitofp %40 : vector<1x256xi32> to vector<1x256xf32>
    %c0_9 = arith.constant 0 : index
    %c0_10 = arith.constant 0 : index
    %42 = vector.load %arg3[%c0_9, %c0_10] : memref<4x9xf32, #tpu.memory_space<vmem>>, vector<4x9xf32>
    %43 = vector.extract_strided_slice %42 {offsets = [0, 0], sizes = [4, 1], strides = [1, 1]} : vector<4x9xf32> to vector<4x1xf32>
    %44 = vector.broadcast %43 : vector<4x1xf32> to vector<4x256xf32>
    %45 = arith.mulf %13, %44 : vector<4x256xf32>
    %46 = vector.extract_strided_slice %42 {offsets = [0, 3], sizes = [4, 1], strides = [1, 1]} : vector<4x9xf32> to vector<4x1xf32>
    %47 = vector.broadcast %46 : vector<4x1xf32> to vector<4x256xf32>
    %48 = arith.mulf %1, %47 : vector<4x256xf32>
    %49 = arith.addf %45, %48 : vector<4x256xf32>
    %50 = vector.extract_strided_slice %42 {offsets = [0, 6], sizes = [4, 1], strides = [1, 1]} : vector<4x9xf32> to vector<4x1xf32>
    %51 = vector.broadcast %50 : vector<4x1xf32> to vector<4x256xf32>
    %52 = arith.mulf %16, %51 : vector<4x256xf32>
    %53 = arith.addf %49, %52 : vector<4x256xf32>
    %54 = vector.extract_strided_slice %42 {offsets = [0, 1], sizes = [4, 1], strides = [1, 1]} : vector<4x9xf32> to vector<4x1xf32>
    %55 = vector.broadcast %54 : vector<4x1xf32> to vector<4x256xf32>
    %56 = arith.mulf %13, %55 : vector<4x256xf32>
    %57 = vector.extract_strided_slice %42 {offsets = [0, 4], sizes = [4, 1], strides = [1, 1]} : vector<4x9xf32> to vector<4x1xf32>
    %58 = vector.broadcast %57 : vector<4x1xf32> to vector<4x256xf32>
    %59 = arith.mulf %1, %58 : vector<4x256xf32>
    %60 = arith.addf %56, %59 : vector<4x256xf32>
    %61 = vector.extract_strided_slice %42 {offsets = [0, 7], sizes = [4, 1], strides = [1, 1]} : vector<4x9xf32> to vector<4x1xf32>
    %62 = vector.broadcast %61 : vector<4x1xf32> to vector<4x256xf32>
    %63 = arith.mulf %16, %62 : vector<4x256xf32>
    %64 = arith.addf %60, %63 : vector<4x256xf32>
    %65 = vector.extract_strided_slice %42 {offsets = [0, 2], sizes = [4, 1], strides = [1, 1]} : vector<4x9xf32> to vector<4x1xf32>
    %66 = vector.broadcast %65 : vector<4x1xf32> to vector<4x256xf32>
    %67 = arith.mulf %13, %66 : vector<4x256xf32>
    %68 = vector.extract_strided_slice %42 {offsets = [0, 5], sizes = [4, 1], strides = [1, 1]} : vector<4x9xf32> to vector<4x1xf32>
    %69 = vector.broadcast %68 : vector<4x1xf32> to vector<4x256xf32>
    %70 = arith.mulf %1, %69 : vector<4x256xf32>
    %71 = arith.addf %67, %70 : vector<4x256xf32>
    %72 = vector.extract_strided_slice %42 {offsets = [0, 8], sizes = [4, 1], strides = [1, 1]} : vector<4x9xf32> to vector<4x1xf32>
    %73 = vector.broadcast %72 : vector<4x1xf32> to vector<4x256xf32>
    %74 = arith.mulf %16, %73 : vector<4x256xf32>
    %75 = arith.addf %71, %74 : vector<4x256xf32>
    %c1_i32_11 = arith.constant 1 : i32
    %76 = tpu.dynamic_rotate %53 by %c1_i32_11 dim 1 : vector<4x256xf32>, i32 -> vector<4x256xf32>
    %77 = vector.broadcast %37 : vector<1x256xf32> to vector<4x256xf32>
    %78 = arith.mulf %76, %77 : vector<4x256xf32>
    %79 = arith.addf %78, %64 : vector<4x256xf32>
    %c255_i32 = arith.constant 255 : i32
    %80 = tpu.dynamic_rotate %75 by %c255_i32 dim 1 : vector<4x256xf32>, i32 -> vector<4x256xf32>
    %81 = vector.broadcast %41 : vector<1x256xf32> to vector<4x256xf32>
    %82 = arith.mulf %80, %81 : vector<4x256xf32>
    %83 = arith.addf %79, %82 : vector<4x256xf32>
    %c0_12 = arith.constant 0 : index
    %c0_13 = arith.constant 0 : index
    %84 = vector.load %arg4[%c0_12, %c0_13] : memref<8x4xf32, #tpu.memory_space<vmem>>, vector<8x4xf32>
    %cst = arith.constant dense<0.000000e+00> : vector<8x256xf32>
    %85 = tpu.matmul %84, %83, %cst {dimension_numbers = #tpu.dot_dimension_numbers<[1], [0], [0], [1], [0, 0, 1, 1], [], []>} : vector<8x4xf32>, vector<4x256xf32>, vector<8x256xf32> -> vector<8x256xf32>
    %c0_14 = arith.constant 0 : index
    %c0_15 = arith.constant 0 : index
    %86 = vector.load %arg5[%c0_14, %c0_15] : memref<8x1xf32, #tpu.memory_space<vmem>>, vector<8x1xf32>
    %87 = vector.broadcast %86 : vector<8x1xf32> to vector<8x256xf32>
    %88 = arith.addf %85, %87 : vector<8x256xf32>
    %c0_16 = arith.constant 0 : index
    %c0_17 = arith.constant 0 : index
    %c0_18 = arith.constant 0 : index
    %89 = vector.load %arg6[%c0_16, %c0_17, %c0_18] : memref<1x8x256xf32, #tpu.memory_space<vmem>>, vector<1x8x256xf32>
    %90 = vector.shape_cast %89 : vector<1x8x256xf32> to vector<8x256xf32>
    %91 = vector.shape_cast %88 : vector<8x256xf32> to vector<1x8x256xf32>
    tpu.vector_store %arg6[%c0_16, %c0_17, %c0_18], %91 {strides = array<i32>} : memref<1x8x256xf32, #tpu.memory_space<vmem>>, vector<1x8x256xf32>,
    return
  }
  func.func @transform_0(%arg0: i32, %arg1: i32) -> (i32, i32, i32) {
    %c0_i32 = arith.constant 0 : i32
    %c0_i32_0 = arith.constant 0 : i32
    return %arg0, %c0_i32, %arg1 : i32, i32, i32
  }
  func.func @transform_1(%arg0: i32, %arg1: i32) -> (i32, i32) {
    %c0_i32 = arith.constant 0 : i32
    %c0_i32_0 = arith.constant 0 : i32
    %c0_i32_1 = arith.constant 0 : i32
    return %c0_i32, %c0_i32_0 : i32, i32
  }
  func.func @transform_2(%arg0: i32, %arg1: i32) -> (i32, i32) {
    %c0_i32 = arith.constant 0 : i32
    %c0_i32_0 = arith.constant 0 : i32
    %c0_i32_1 = arith.constant 0 : i32
    return %c0_i32, %c0_i32_0 : i32, i32
  }
  func.func @transform_3(%arg0: i32, %arg1: i32) -> (i32, i32) {
    %c0_i32 = arith.constant 0 : i32
    %c0_i32_0 = arith.constant 0 : i32
    %c0_i32_1 = arith.constant 0 : i32
    return %c0_i32, %c0_i32_0 : i32, i32
  }
  func.func @transform_4(%arg0: i32, %arg1: i32) -> (i32, i32, i32) {
    %c0_i32 = arith.constant 0 : i32
    %c0_i32_0 = arith.constant 0 : i32
    return %arg0, %c0_i32, %arg1 : i32, i32, i32
  }
}

</mosaic_0001>

<llo_original>
// kernel: tpu_custom_call.1
$region0: #{tpu_custom_call.1}
  #allocation0 [shape = 'u32[]', space=smem, size = 0x4, offset = 0x4, fixed_abs, tag = 'smem constant byte address 0x4 - core index']
  #allocation1 [shape = 'u32[144,128]{1,0:T(1,128)}', space=vmem, size = 0x12000, scoped, tag = 'internal scratch']
  %s0 = inlined_call_operand.vmem [shape: f32[2,4,256], index: 0, kind: input, shape index: {}]
  %s1 = inlined_call_operand.vmem [shape: f32[4,9], index: 1, kind: input, shape index: {}]
  %s2 = inlined_call_operand.vmem [shape: f32[8,4], index: 2, kind: input, shape index: {}]
  %s3 = inlined_call_operand.vmem [shape: f32[8,1], index: 3, kind: input, shape index: {}]
  %s4 = inlined_call_operand.hbm [shape: f32[2,8,256], index: 4, kind: output, shape index: {}]
  %s5 = sld [smem:[#allocation0]]
  $region49: #{tpu_custom_call.1} parent=0
    _
  %s7 = ssub.s32 1, %s5
  %s8 = scalar_select 0, %s7, %s5
  $region1: #{tpu_custom_call.1} parent=0
    #allocation2 [shape = 'u8[16384]{0}', space=vmem, size = 0x4000, scoped, tag = 'output window, operand 0']
    #allocation3 [shape = 's32[2]{0}', space=sflag, size = 0x8, scoped, tag = 'scoped memory for tpu_custom_call.1']
    %9 = vsyncpa [#allocation3], 0
    %s10 = scalar_lea.sflag [#allocation3], 1
    %11 = vsyncpa %s10, 0
    loop: start=0, step=1, limit=4
    $region2: #{tpu_custom_call.1} parent=1 // loop_pre_header
      _
    $region3: #{tpu_custom_call.1} parent=1 // loop_header
      %s13 = sphi 0, %s17
      %p14 = scmp.ge.s32.totalorder %s13, 4
      %s20 = sphi 0, %s32
      %s21 = sphi 0, %s28
      %s22 = sphi 0, %s20
      %s23 = sphi 0, %s21
      %s24 = sphi 0, %s22
      %s25 = sphi 0, %s23
      %s37 = sphi 0, %s39
      %s40 = sphi 0, %s37
      %s41 = sphi 0, %s40
      %s57 = sphi 0, %s41
      %s61 = sphi 0, %s61
      %s63 = sphi 0, %s61
      %s64 = sphi 0, %s63
      %s78 = sphi 0, %s64
      %s82 = sphi 0, %s82
      %s84 = sphi 0, %s82
      %s85 = sphi 0, %s84
      %s99 = sphi 0, %s85
      %s103 = sphi 0, %s103
      %s105 = sphi 0, %s103
      %s106 = sphi 0, %s105
      %s120 = sphi 0, %s106
      %s128 = sphi 0, %s130
      %s131 = sphi 0, %s128
      %s132 = sphi 0, %s131
      %s148 = sphi 0, %s132
    $region4: #{tpu_custom_call.1} parent=1 // loop_header_branch
      %16 = sbr.rel (%p14) target = $region8
    $region5: #{tpu_custom_call.1} parent=1 // loop_body
      %s18 = ssub.s32 %s13, 1
      %s19 = ssub.s32 %s13, 2
      %s26 = sadd.s32 1, %s21
      %p27 = scmp.ge.s32.totalorder %s26, 1
      %s28 = scalar_select %p27, 0, %s26
      %s29 = sadd.s32 1, %s20
      %s30 = scalar_select %p27, %s29, %s20
      %p31 = scmp.ge.s32.totalorder %s30, 2
      %s32 = scalar_select %p31, 0, %s30
      %s33 = ssub.s32 %s20, %s32
      %s34 = ssub.s32 %s21, %s28
      %s35 = sor.u32 %s33, %s34
      %p36 = scmp.eq.s32.totalorder %s35, 0
      %s38 = sadd.s32 %s37, 1
      %s39 = scalar_select %p36, %s37, %s38
      %p42 = pneg %p36
      %p43 = scmp.eq.s32.totalorder %s13, 1
      %p44 = por %p42, %p43
      %p45 = scmp.ne.s32.totalorder %s37, %s40
      %p46 = scmp.eq.s32.totalorder %s13, 0
      %p47 = por %p45, %p46
      %p48 = scmp.ne.s32.totalorder %s37, %s40
      %p49 = scmp.eq.s32.totalorder %s18, 1
      %p50 = por %p48, %p49
      %p51 = scmp.ne.s32.totalorder %s40, %s41
      %p52 = scmp.eq.s32.totalorder %s18, 0
      %p53 = por %p51, %p52
      %p54 = scmp.ne.s32.totalorder %s40, %s41
      %p55 = scmp.eq.s32.totalorder %s19, 1
      %p56 = por %p54, %p55
      %p58 = scmp.ne.s32.totalorder %s41, %s57
      %p59 = scmp.eq.s32.totalorder %s19, 0
      %p60 = por %p58, %p59
      %s62 = sadd.s32 %s61, 1
      %p65 = scmp.eq.s32.totalorder %s13, 1
      %p66 = scmp.ne.s32.totalorder %s61, %s63
      %p67 = scmp.eq.s32.totalorder %s13, 0
      %p68 = por %p66, %p67
      %p69 = scmp.ne.s32.totalorder %s61, %s63
      %p70 = scmp.eq.s32.totalorder %s18, 1
      %p71 = por %p69, %p70
      %p72 = scmp.ne.s32.totalorder %s63, %s64
      %p73 = scmp.eq.s32.totalorder %s18, 0
      %p74 = por %p72, %p73
      %p75 = scmp.ne.s32.totalorder %s63, %s64
      %p76 = scmp.eq.s32.totalorder %s19, 1
      %p77 = por %p75, %p76
      %p79 = scmp.ne.s32.totalorder %s64, %s78
      %p80 = scmp.eq.s32.totalorder %s19, 0
      %p81 = por %p79, %p80
      %s83 = sadd.s32 %s82, 1
      %p86 = scmp.eq.s32.totalorder %s13, 1
      %p87 = scmp.ne.s32.totalorder %s82, %s84
      %p88 = scmp.eq.s32.totalorder %s13, 0
      %p89 = por %p87, %p88
      %p90 = scmp.ne.s32.totalorder %s82, %s84
      %p91 = scmp.eq.s32.totalorder %s18, 1
      %p92 = por %p90, %p91
      %p93 = scmp.ne.s32.totalorder %s84, %s85
      %p94 = scmp.eq.s32.totalorder %s18, 0
      %p95 = por %p93, %p94
      %p96 = scmp.ne.s32.totalorder %s84, %s85
      %p97 = scmp.eq.s32.totalorder %s19, 1
      %p98 = por %p96, %p97
      %p100 = scmp.ne.s32.totalorder %s85, %s99
      %p101 = scmp.eq.s32.totalorder %s19, 0
      %p102 = por %p100, %p101
      %s104 = sadd.s32 %s103, 1
      %p107 = scmp.eq.s32.totalorder %s13, 1
      %p108 = scmp.ne.s32.totalorder %s103, %s105
      %p109 = scmp.eq.s32.totalorder %s13, 0
      %p110 = por %p108, %p109
      %p111 = scmp.ne.s32.totalorder %s103, %s105
      %p112 = scmp.eq.s32.totalorder %s18, 1
      %p113 = por %p111, %p112
      %p114 = scmp.ne.s32.totalorder %s105, %s106
      %p115 = scmp.eq.s32.totalorder %s18, 0
      %p116 = por %p114, %p115
      %p117 = scmp.ne.s32.totalorder %s105, %s106
      %p118 = scmp.eq.s32.totalorder %s19, 1
      %p119 = por %p117, %p118
      %p121 = scmp.ne.s32.totalorder %s106, %s120
      %p122 = scmp.eq.s32.totalorder %s19, 0
      %p123 = por %p121, %p122
      %s124 = ssub.s32 %s20, %s32
      %s125 = ssub.s32 %s21, %s28
      %s126 = sor.u32 %s124, %s125
      %p127 = scmp.eq.s32.totalorder %s126, 0
      %s129 = sadd.s32 %s128, 1
      %s130 = scalar_select %p127, %s128, %s129
      %p133 = pneg %p127
      %p134 = scmp.eq.s32.totalorder %s13, 1
      %p135 = por %p133, %p134
      %p136 = scmp.ne.s32.totalorder %s128, %s131
      %p137 = scmp.eq.s32.totalorder %s13, 0
      %p138 = por %p136, %p137
      %p139 = scmp.ne.s32.totalorder %s128, %s131
      %p140 = scmp.eq.s32.totalorder %s18, 1
      %p141 = por %p139, %p140
      %p142 = scmp.ne.s32.totalorder %s131, %s132
      %p143 = scmp.eq.s32.totalorder %s18, 0
      %p144 = por %p142, %p143
      %p145 = scmp.ne.s32.totalorder %s131, %s132
      %p146 = scmp.eq.s32.totalorder %s19, 1
      %p147 = por %p145, %p146
      %p149 = scmp.ne.s32.totalorder %s132, %s148
      %p150 = scmp.eq.s32.totalorder %s19, 0
      %p151 = por %p149, %p150
      %p152 = scmp.le.s32.totalorder 1, %s13
      %p153 = scmp.lt.s32.totalorder %s13, 3
      %p154 = pnand %p152, %p153
      %p155 = pneg %p154
      // Predicated region
      $region9: #{tpu_custom_call.1} parent=5 // pred_check
        _
      $region10: #{tpu_custom_call.1} parent=5 // pred_check_branch
        %157 = sbr.rel (%p154) target = $region12
      $region11: #{tpu_custom_call.1} parent=5 // pred_region
        %s158 = ssub.s32 %s13, 1
        // Predicated region
        $region13: #{tpu_custom_call.1} parent=11 // pred_check
          %p159 = pneg %p74
        $region14: #{tpu_custom_call.1} parent=11 // pred_check_branch
          %161 = sbr.rel (%p159) target = $region16
        $region15: #{tpu_custom_call.1} parent=11 // pred_region
          _
        $region16: #{tpu_custom_call.1} parent=11 // pred_fallthru
          _
        // Predicated region
        $region17: #{tpu_custom_call.1} parent=11 // pred_check
          %p162 = pneg %p95
        $region18: #{tpu_custom_call.1} parent=11 // pred_check_branch
          %164 = sbr.rel (%p162) target = $region20
        $region19: #{tpu_custom_call.1} parent=11 // pred_region
          _
        $region20: #{tpu_custom_call.1} parent=11 // pred_fallthru
          _
        // Predicated region
        $region21: #{tpu_custom_call.1} parent=11 // pred_check
          %p165 = pneg %p116
        $region22: #{tpu_custom_call.1} parent=11 // pred_check_branch
          %167 = sbr.rel (%p165) target = $region24
        $region23: #{tpu_custom_call.1} parent=11 // pred_region
          _
        $region24: #{tpu_custom_call.1} parent=11 // pred_fallthru
          _
      $region12: #{tpu_custom_call.1} parent=5 // pred_fallthru
        _
      %p168 = scmp.lt.s32.totalorder %s13, 2
      // Predicated region
      $region25: #{tpu_custom_call.1} parent=5 // pred_check
        %p169 = pneg %p168
      $region26: #{tpu_custom_call.1} parent=5 // pred_check_branch
        %171 = sbr.rel (%p169) target = $region28
      $region27: #{tpu_custom_call.1} parent=5 // pred_region
        // Predicated region
        $region29: #{tpu_custom_call.1} parent=27 // pred_check
          %p172 = pneg %p47
        $region30: #{tpu_custom_call.1} parent=27 // pred_check_branch
          %174 = sbr.rel (%p172) target = $region32
        $region31: #{tpu_custom_call.1} parent=27 // pred_region
          %s175 = smul.u32 2, %s21
          %p176 = scmp.lt.s32.totalorder %s20, 1
          %s177 = scalar_select %p176, %s20, 1
          %p178 = scmp.lt.s32.totalorder %s175, 1
          %s179 = scalar_select %p178, %s175, 1
          %s180 = smul.addr %s177, 2
          %s181 = sadd.s32 %s179, %s180
          %s182 = smul.addr %s181, 4
          %s183 = scalar_lea.vmem %s0, %s182
          %s184 = smul.u32 2, %s21
        $region32: #{tpu_custom_call.1} parent=27 // pred_fallthru
          _
      $region28: #{tpu_custom_call.1} parent=5 // pred_fallthru
        _
      %p185 = scmp.le.s32.totalorder 1, %s13
      %p186 = scmp.lt.s32.totalorder %s13, 3
      %p187 = pnand %p185, %p186
      %p188 = pneg %p187
      // Predicated region
      $region33: #{tpu_custom_call.1} parent=5 // pred_check
        _
      $region34: #{tpu_custom_call.1} parent=5 // pred_check_branch
        %190 = sbr.rel (%p187) target = $region36
      $region35: #{tpu_custom_call.1} parent=5 // pred_region
        %s191 = ssub.s32 %s13, 1
        %s192 = smul.u32 2, %s23
        %p193 = scmp.lt.s32.totalorder %s22, 1
        %s194 = scalar_select %p193, %s22, 1
        %p195 = scmp.lt.s32.totalorder %s192, 1
        %s196 = scalar_select %p195, %s192, 1
        %s197 = smul.addr %s194, 2
        %s198 = sadd.s32 %s196, %s197
        %s199 = smul.addr %s198, 4
        %s200 = scalar_lea.vmem %s0, %s199
        %p201 = pneg %p53
        %p202 = pneg %p50
        %p203 = pneg %p74
        %p204 = pneg %p71
        %p205 = pneg %p95
        %p206 = pneg %p92
        %p207 = pneg %p116
        %p208 = pneg %p113
        %p209 = pneg %p144
        %p210 = pneg %p141
        %s211 = sand.u32 %s131, 1
        %s212 = scalar_lea.sflag [#allocation3], %s211
        %s213 = sand.u32 %s131, 1
        %s214 = smul.addr %s213, 16
        %s215 = scalar_lea.vmem [#allocation2], %s214
        %s216 = smul.u32 2, %s23
        %p217 = scmp.lt.s32.totalorder %s22, 1
        %s218 = scalar_select %p217, %s22, 1
        %p219 = scmp.lt.s32.totalorder %s216, 1
        %s220 = scalar_select %p219, %s216, 1
        %s221 = smul.addr %s218, 2
        %s222 = sadd.s32 %s220, %s221
        %s223 = smul.addr %s222, 4
        %s224 = scalar_lea.vmem %s0, %s223
        %s225 = smul.u32 2, %s23
        %s226 = smul.u32 2, %s23
        %v227 = vld [vmem:[%s224] sm:$0xff]
        %v228 = vlaneseq
        %v229 = vand.u32 %v228, 127
        %v230 = vadd.s32 %v229, 128
        %vm231 = vcmp.ge.s32.totalorder %v229, 16
        %vm232 = vcmp.ge.s32.totalorder %v230, 16
        %v233 = vsel %vm231, 1, 0
        %v234 = vsel %vm232, 1, 0
        %v235 = vcvt.s32.f32 %v233
        %v236 = vcvt.s32.f32 %v234
        %vm237 = vcmp.lt.s32.totalorder %v229, 240
        %vm238 = vcmp.lt.s32.totalorder %v230, 240
        %v239 = vsel %vm237, 1, 0
        %v240 = vsel %vm238, 1, 0
        %v241 = vcvt.s32.f32 %v239
        %v242 = vcvt.s32.f32 %v240
        %v244 = vcombine.high %v227, %v227
        %246 = vrot.lane.b32.xlu0 %v227, 16
        %v247 = vpop.permute.xlu0 %246
        %248 = vrot.lane.b32.xlu0 %v244, 16
        %v249 = vpop.permute.xlu0 %248
        %vm250 = vcmp.lt.s32.totalorder %v229, 16
        %v251 = vsel %vm250, %v247, %v249
        %v252 = vsel %vm250, %v249, %v247
        %v253 = vmul.f32 %v252, %v235
        %v254 = vmul.f32 %v251, %v236
        %255 = vrot.lane.b32.xlu0 %v227, 112
        %v256 = vpop.permute.xlu0 %255
        %257 = vrot.lane.b32.xlu0 %v244, 112
        %v258 = vpop.permute.xlu0 %257
        %vm259 = vcmp.lt.s32.totalorder %v229, 112
        %v260 = vsel %vm259, %v256, %v258
        %v261 = vsel %vm259, %v258, %v256
        %v262 = vmul.f32 %v260, %v241
        %v263 = vmul.f32 %v261, %v242
        %vm264 = vcmp.lt.s32.totalorder %v229, 0
        %v265 = vsub.s32 0, %v229
        %v266 = vsel %vm264, %v265, %v229
        %v267 = vshrl.u32 %v266, 4
        %v268 = vand.u32 %v266, 15
        %v269 = vsub.s32 0, %v268
        %v270 = vsel %vm264, %v269, %v268
        %vm271 = vcmp.lt.s32.totalorder %v230, 0
        %v272 = vsub.s32 0, %v230
        %v273 = vsel %vm271, %v272, %v230
        %v274 = vshrl.u32 %v273, 4
        %v275 = vand.u32 %v273, 15
        %v276 = vsub.s32 0, %v275
        %v277 = vsel %vm271, %v276, %v275
        %vm278 = vcmp.ne.s32.totalorder %v270, 0
        %vm279 = vcmp.ne.s32.totalorder %v277, 0
        %vm280 = vcmp.lt.s32.totalorder %v270, 0
        %vm281 = vcmp.lt.s32.totalorder %v277, 0
        %vm282 = vmand %vm280, %vm278
        %vm283 = vmand %vm281, %vm279
        %v284 = vadd.s32 %v270, 16
        %v285 = vadd.s32 %v277, 16
        %v286 = vsel %vm282, %v284, %v270
        %v287 = vsel %vm283, %v285, %v277
        %vm288 = vcmp.gt.s32.totalorder %v286, 0
        %vm289 = vcmp.gt.s32.totalorder %v287, 0
        %v290 = vsel %vm288, 1, 0
        %v291 = vsel %vm289, 1, 0
        %v292 = vcvt.s32.f32 %v290
        %v293 = vcvt.s32.f32 %v291
        %vm294 = vcmp.lt.s32.totalorder %v286, 15
        %vm295 = vcmp.lt.s32.totalorder %v287, 15
        %v296 = vsel %vm294, 1, 0
        %v297 = vsel %vm295, 1, 0
        %v298 = vcvt.s32.f32 %v296
        %v299 = vcvt.s32.f32 %v297
        %v300 = vld [vmem:[%s1] sm:$0xf]
        %302 = vset.pattern.permute.xlu0 0
        %303 = vperm.xlu0 %302, %v300
        %v304 = vpop.permute.xlu0 %303
        %v306 = vmul.f32 %v253, %v304
        %v307 = vmul.f32 %v254, %v304
        %308 = vset.pattern.permute.xlu0 3
        %309 = vperm.xlu0 %308, %v300
        %v310 = vpop.permute.xlu0 %309
        %v312 = vunpack.c.l.s4 839922192
        %v313 = vunpack.c.0.s8 %v312
        %v314 = vlaneseq
        %v315 = vshrl.u32 %v314, 7
        %v316 = vsub.s32 %v313, %v315
        %v317 = vrot.slane %v310, %v316
        %v319 = vmul.f32 %v227, %v317
        %v321 = vcombine.high %v319, %v319
        %v323 = vadd.f32 %v306, %v319
        %v324 = vadd.f32 %v307, %v321
        %325 = vset.pattern.permute.xlu0 6
        %326 = vperm.xlu0 %325, %v300
        %v327 = vpop.permute.xlu0 %326
        %v329 = vmul.f32 %v262, %v327
        %v330 = vmul.f32 %v263, %v327
        %v331 = vadd.f32 %v323, %v329
        %v332 = vadd.f32 %v324, %v330
        %333 = vset.pattern.permute.xlu0 1
        %334 = vperm.xlu0 %333, %v300
        %v335 = vpop.permute.xlu0 %334
        %v337 = vmul.f32 %v253, %v335
        %v338 = vmul.f32 %v254, %v335
        %339 = vset.pattern.permute.xlu0 4
        %340 = vperm.xlu0 %339, %v300
        %v341 = vpop.permute.xlu0 %340
        %v343 = vunpack.c.l.s4 839922192
        %v344 = vunpack.c.0.s8 %v343
        %v345 = vlaneseq
        %v346 = vshrl.u32 %v345, 7
        %v347 = vsub.s32 %v344, %v346
        %v348 = vrot.slane %v341, %v347
        %v350 = vmul.f32 %v227, %v348
        %v352 = vcombine.high %v350, %v350
        %v354 = vadd.f32 %v337, %v350
        %v355 = vadd.f32 %v338, %v352
        %356 = vset.pattern.permute.xlu0 7
        %357 = vperm.xlu0 %356, %v300
        %v358 = vpop.permute.xlu0 %357
        %v360 = vmul.f32 %v262, %v358
        %v361 = vmul.f32 %v263, %v358
        %v362 = vadd.f32 %v354, %v360
        %v363 = vadd.f32 %v355, %v361
        %364 = vset.pattern.permute.xlu0 2
        %365 = vperm.xlu0 %364, %v300
        %v366 = vpop.permute.xlu0 %365
        %v368 = vmul.f32 %v253, %v366
        %v369 = vmul.f32 %v254, %v366
        %370 = vset.pattern.permute.xlu0 5
        %371 = vperm.xlu0 %370, %v300
        %v372 = vpop.permute.xlu0 %371
        %v374 = vunpack.c.l.s4 839922192
        %v375 = vunpack.c.0.s8 %v374
        %v376 = vlaneseq
        %v377 = vshrl.u32 %v376, 7
        %v378 = vsub.s32 %v375, %v377
        %v379 = vrot.slane %v372, %v378
        %v381 = vmul.f32 %v227, %v379
        %v383 = vcombine.high %v381, %v381
        %v385 = vadd.f32 %v368, %v381
        %v386 = vadd.f32 %v369, %v383
        %387 = vset.pattern.permute.xlu0 8
        %388 = vperm.xlu0 %387, %v300
        %v389 = vpop.permute.xlu0 %388
        %v391 = vmul.f32 %v262, %v389
        %v392 = vmul.f32 %v263, %v389
        %v393 = vadd.f32 %v385, %v391
        %v394 = vadd.f32 %v386, %v392
        %395 = vrot.lane.b32.xlu0 %v331, 1
        %v396 = vpop.permute.xlu0 %395
        %397 = vrot.lane.b32.xlu0 %v332, 1
        %v398 = vpop.permute.xlu0 %397
        %vm399 = vcmp.lt.s32.totalorder %v229, 1
        %v400 = vsel %vm399, %v396, %v398
        %v401 = vsel %vm399, %v398, %v396
        %v402 = vmul.f32 %v401, %v292
        %v403 = vmul.f32 %v400, %v293
        %v404 = vadd.f32 %v402, %v362
        %v405 = vadd.f32 %v403, %v363
        %406 = vrot.lane.b32.xlu0 %v393, 127
        %v407 = vpop.permute.xlu0 %406
        %408 = vrot.lane.b32.xlu0 %v394, 127
        %v409 = vpop.permute.xlu0 %408
        %vm410 = vcmp.lt.s32.totalorder %v229, 127
        %v411 = vsel %vm410, %v407, %v409
        %v412 = vsel %vm410, %v409, %v407
        %v413 = vmul.f32 %v411, %v298
        %v414 = vmul.f32 %v412, %v299
        %v415 = vadd.f32 %v404, %v413
        %v416 = vadd.f32 %v405, %v414
        %v417 = vld [vmem:[%s2] sm:$0xff]
        %v418 = vld [vmem:[%s3] sm:$0xff]
        %420 = vset.pattern.permute.xlu0 0
        %421 = vperm.xlu0 %420, %v418
        %v422 = vpop.permute.xlu0 %421
        %vm424 = vcmask 31744
        %v426 = vsel %vm424, %v417, 0
        %vm428 = vcmask 1043456
        %v430 = vsel %vm428, %v415, 0
        %v433 = vsel %vm428, %v416, 0
        %435 = vmatprep.subr.mxu0 0.0
        %436 = vmatpush1.msra.mxu0 0.0
        %437 = vmatprep.subr.mxu0 0.0
        %438 = vmatpush1.msra.mxu0 0.0
        %439 = vmatprep.subr.mxu0 0.0
        %440 = vmatpush1.msra.mxu0 0.0
        %441 = vmatprep.subr.mxu0 0.0
        %442 = vmatpush1.msra.mxu0 0.0
        %443 = vmatprep.subr.mxu0 0.0
        %444 = vmatpush1.msra.mxu0 0.0
        %445 = vmatprep.subr.mxu0 0.0
        %446 = vmatpush1.msra.mxu0 0.0
        %447 = vmatprep.subr.mxu0 0.0
        %448 = vmatpush1.msra.mxu0 0.0
        %449 = vmatprep.subr.mxu0 0.0
        %450 = vmatpush1.msra.mxu0 0.0
        %451 = vmatprep.subr.mxu0 0.0
        %452 = vmatpush1.msra.mxu0 0.0
        %453 = vmatprep.subr.mxu0 0.0
        %454 = vmatpush1.msra.mxu0 0.0
        %455 = vmatprep.subr.mxu0 0.0
        %456 = vmatpush1.msra.mxu0 0.0
        %457 = vmatprep.subr.mxu0 0.0
        %458 = vmatpush1.msra.mxu0 0.0
        %459 = vmatprep.subr.mxu0 0.0
        %460 = vmatpush1.msra.mxu0 0.0
        %461 = vmatprep.subr.mxu0 0.0
        %462 = vmatpush1.msra.mxu0 0.0
        %463 = vmatprep.subr.mxu0 0.0
        %464 = vmatpush1.msra.mxu0 0.0
        %465 = vmatprep.subr.mxu0 %v433
        %466 = vmatpush1.msra.mxu0 %v430
        %467 = vmatprep.subr.mxu0 0.0
        %468 = vmatpush2.msra.mxu0 0.0
        %469 = vmatprep.subr.mxu0 0.0
        %470 = vmatpush2.msra.mxu0 0.0
        %471 = vmatprep.subr.mxu0 0.0
        %472 = vmatpush2.msra.mxu0 0.0
        %473 = vmatprep.subr.mxu0 0.0
        %474 = vmatpush2.msra.mxu0 0.0
        %475 = vmatprep.subr.mxu0 0.0
        %476 = vmatpush2.msra.mxu0 0.0
        %477 = vmatprep.subr.mxu0 0.0
        %478 = vmatpush2.msra.mxu0 0.0
        %479 = vmatprep.subr.mxu0 0.0
        %480 = vmatpush2.msra.mxu0 0.0
        %481 = vmatprep.subr.mxu0 0.0
        %482 = vmatpush2.msra.mxu0 0.0
        %483 = vmatprep.subr.mxu0 0.0
        %484 = vmatpush2.msra.mxu0 0.0
        %485 = vmatprep.subr.mxu0 0.0
        %486 = vmatpush2.msra.mxu0 0.0
        %487 = vmatprep.subr.mxu0 0.0
        %488 = vmatpush2.msra.mxu0 0.0
        %489 = vmatprep.subr.mxu0 0.0
        %490 = vmatpush2.msra.mxu0 0.0
        %491 = vmatprep.subr.mxu0 0.0
        %492 = vmatpush2.msra.mxu0 0.0
        %493 = vmatprep.subr.mxu0 0.0
        %494 = vmatpush2.msra.mxu0 0.0
        %495 = vmatprep.subr.mxu0 0.0
        %496 = vmatpush2.msra.mxu0 0.0
        %497 = vmatprep.subr.mxu0 0.0
        %498 = vmatpush2.msra.mxu0 0.0
        %499 = vmatprep.mubr.f32.mxu0 0.0
        %500 = vmatmul.mubr.f32.gmra.mxu0 %v426
        %v501 = vpop.f32.mrf.mxu0
        %v502 = vadd.f32 %v422, %v501
        %v503 = vpop.f32.mrf.mxu0
        %v504 = vadd.f32 %v422, %v503
        %505 = vdwg.mxu0
        %506 = vst [vmem:[%s215] sm:$0xff] %v502
        %507 = vst [vmem:[%s215 + $0x8] sm:$0xff] %v504
        %s508 = sand.u32 %s131, 1
        %s509 = scalar_lea.sflag [#allocation3], %s508
        %s510 = sand.u32 %s131, 1
        %s511 = smul.addr %s510, 16
        %s512 = scalar_lea.vmem [#allocation2], %s511
        // Predicated region
        $region37: #{tpu_custom_call.1} parent=35 // pred_check
          %p513 = pneg %p141
        $region38: #{tpu_custom_call.1} parent=35 // pred_check_branch
          %515 = sbr.rel (%p513) target = $region40
        $region39: #{tpu_custom_call.1} parent=35 // pred_region
          %s516 = smul.u32 2, %s23
          %s518 = ssub.s32 256, 256
          %519 = vsyncadd %s509, %s518
          %s520 = smul.addr %s22, 2
          %s521 = sadd.s32 %s516, %s520
          %s522 = smul.addr %s521, 128
          %s523 = scalar_lea.hbm %s4, %s522
          %s525 = sshll.u32 %s512, 4
          %s526 = int_to_ptr.vmem [resolvable:$true] %s525
          %528 = dma.vmem_to_hbm [thread:$0]  %s526, 256, %s523, %s509
        $region40: #{tpu_custom_call.1} parent=35 // pred_fallthru
          _
      $region36: #{tpu_custom_call.1} parent=5 // pred_fallthru
        _
      %p529 = scmp.le.s32.totalorder 2, %s13
      // Predicated region
      $region41: #{tpu_custom_call.1} parent=5 // pred_check
        %p530 = pneg %p529
      $region42: #{tpu_custom_call.1} parent=5 // pred_check_branch
        %532 = sbr.rel (%p530) target = $region44
      $region43: #{tpu_custom_call.1} parent=5 // pred_region
        %s533 = ssub.s32 %s13, 2
        // Predicated region
        $region45: #{tpu_custom_call.1} parent=43 // pred_check
          %p534 = pneg %p147
        $region46: #{tpu_custom_call.1} parent=43 // pred_check_branch
          %536 = sbr.rel (%p534) target = $region48
        $region47: #{tpu_custom_call.1} parent=43 // pred_region
          %s537 = sand.u32 %s132, 1
          %s538 = scalar_lea.sflag [#allocation3], %s537
          %s539 = sand.u32 %s132, 1
          %s540 = smul.addr %s539, 16
          %s541 = scalar_lea.vmem [#allocation2], %s540
          %542 = dma.done %s538, 256
        $region48: #{tpu_custom_call.1} parent=43 // pred_fallthru
          _
      $region44: #{tpu_custom_call.1} parent=5 // pred_fallthru
        _
    $region6: #{tpu_custom_call.1} parent=1 // loop_footer
      %s17 = sadd.s32 1, %s13
    $region7: #{tpu_custom_call.1} parent=1 // loop_footer_branch
      %12 = sbr.rel target = $region3
    $region8: #{tpu_custom_call.1} parent=1 // loop_exit
      _
    %543 = vsyncpa [#allocation3], 1
    %s544 = scalar_lea.sflag [#allocation3], 1
    %545 = vsyncpa %s544, 1

</llo_original>
